<compile_context>
chip_gen: v5e
topology: v5e:2x2
jax: 0.10.0
libtpu: 0.0.40
codegen_flags: <defaults>
</compile_context>

<pallas_src>
import functools
import math

import jax
import jax.numpy as jnp
from jax.experimental import pallas as pl
from jax.experimental.pallas import tpu as pltpu

D_MODEL = 32        # small, consistent with the module (d_model in torch is 768)
N_HEADS = 4         # d_model % n_heads == 0, head_dim = 8
SEQ = 8
BATCH = 2
DROP_P = 0.25       # TODO(synk): dropout on attention weights is identity here (eval mode);
                    # stateful train-time dropout is not reproduced.


def mha_kernel(x_ref, wqkv_ref, bqkv_ref, wo_ref, bo_ref,
               out_ref, attn_ref, *, n_heads, batch, seq):
    # x_ref:    (B*S, D)
    # wqkv_ref: (D, 3D)  -- Q block pre-scaled by 1/sqrt(dh)
    # bqkv_ref: (1, 3D)
    # out_ref:  (B*S, D)
    # attn_ref: (B*S, H*S) -- lane-denser slab; reshaped to (B, H, S, S) in the wrapper
    x = x_ref[...]
    D = x.shape[-1]
    dh = D // n_heads

    # Single fused QKV projection (one MXU pass instead of three).
    qkv = jnp.dot(x, wqkv_ref[...], preferred_element_type=jnp.float32) + bqkv_ref[...]
    q = qkv[:, 0 * D:1 * D]        # already scaled by 1/sqrt(dh) (folded into weights)
    k = qkv[:, 1 * D:2 * D]
    v = qkv[:, 2 * D:3 * D]

    ctx_rows = []
    attn_rows = []
    for b in range(batch):                      # static unrolled loops (B*H = 8 tiny heads)
        r0 = b * seq
        qb = q[r0:r0 + seq]                     # (S, D) static row slice
        kb = k[r0:r0 + seq]
        vb = v[r0:r0 + seq]
        ctx_h = []
        attn_h = []
        for h in range(n_heads):
            c0 = h * dh
            qh = qb[:, c0:c0 + dh]              # (S, dh) static column slices, no transposes
            kh = kb[:, c0:c0 + dh]
            vh = vb[:, c0:c0 + dh]
            # scores = (Q/scale) @ K^T  -- contraction on last dims, no materialized K^T
            s = jax.lax.dot_general(qh, kh, (((1,), (1,)), ((), ())),
                                    preferred_element_type=jnp.float32)   # (S, S)
            # TODO(synk): mask branch (attention_score[mask] = -1e10) not implemented;
            #             mask=None path only.
            m = jnp.max(s, axis=-1, keepdims=True)
            e = jnp.exp(s - m)
            w = e * pl.reciprocal(jnp.sum(e, axis=-1, keepdims=True), approx=False)
            attn_h.append(w)
            ctx_h.append(jnp.dot(w, vh, preferred_element_type=jnp.float32))   # (S, dh)
        ctx_rows.append(jnp.concatenate(ctx_h, axis=-1))      # (S, D)
        attn_rows.append(jnp.concatenate(attn_h, axis=-1))    # (S, H*S)

    ctx = jnp.concatenate(ctx_rows, axis=0)                   # (B*S, D)
    out_ref[...] = (jnp.dot(ctx, wo_ref[...], preferred_element_type=jnp.float32)
                    + bo_ref[...])
    attn_ref[...] = jnp.concatenate(attn_rows, axis=0)        # (B*S, H*S)


def mha_forward(x, params, n_heads):
    B, S, D = x.shape
    inv_scale = 1.0 / math.sqrt(D / n_heads)
    wq, bq, wk, bk, wv, bv, wo, bo = params

    # Fuse Q|K|V into one GEMM operand; fold 1/scale into the Q block at trace time.
    wqkv = jnp.concatenate([wq * inv_scale, wk, wv], axis=1)   # (D, 3D)
    bqkv = jnp.concatenate([bq * inv_scale, bk, bv], axis=1)   # (1, 3D)

    x2 = x.reshape(B * S, D)

    kernel = functools.partial(mha_kernel, n_heads=n_heads, batch=B, seq=S)
    vmem = lambda: pl.BlockSpec(memory_space=pltpu.MemorySpace.VMEM)

    out2, attn_slab = pl.pallas_call(
        kernel,
        out_shape=(
            jax.ShapeDtypeStruct((B * S, D), jnp.float32),
            jax.ShapeDtypeStruct((B * S, n_heads * S), jnp.float32),
        ),
        in_specs=[vmem() for _ in range(5)],
        out_specs=(vmem(), vmem()),
    )(x2, wqkv, bqkv, wo, bo)

    out = out2.reshape(B, S, D)
    # slab[b*S + q, h*S + k] == attn[b, h, q, k]
    attn = attn_slab.reshape(B, S, n_heads, S).transpose(0, 2, 1, 3)
    return out, attn


def init_params(key, d_model):
    ks = jax.random.split(key, 8)
    def w(k):
        return jax.random.normal(k, (d_model, d_model), jnp.float32) * 0.02
    def b(k):
        return jax.random.normal(k, (1, d_model), jnp.float32) * 0.02
    return (w(ks[0]), b(ks[1]), w(ks[2]), b(ks[3]),
            w(ks[4]), b(ks[5]), w(ks[6]), b(ks[7]))


def mha_reference(x, params, n_heads):
    wq, bq, wk, bk, wv, bv, wo, bo = params
    B, S, D = x.shape
    dh = D // n_heads
    scale = jnp.sqrt(jnp.array(D / n_heads, jnp.float32))
    q = x @ wq + bq[0]
    k = x @ wk + bk[0]
    v = x @ wv + bv[0]
    q = q.reshape(B, S, n_heads, dh).transpose(0, 2, 1, 3)
    k = k.reshape(B, S, n_heads, dh).transpose(0, 2, 1, 3)
    v = v.reshape(B, S, n_heads, dh).transpose(0, 2, 1, 3)
    scores = jnp.einsum('bhqd,bhkd->bhqk', q, k) / scale
    w = jax.nn.softmax(scores, axis=-1)
    ctx = jnp.einsum('bhqk,bhkd->bhqd', w, v)
    ctx = ctx.transpose(0, 2, 1, 3).reshape(B, S, D)
    return ctx @ wo + bo[0], w


if __name__ == "__main__":
    key = jax.random.PRNGKey(0)
    kx, kp = jax.random.split(key)
    x = jax.random.normal(kx, (BATCH, SEQ, D_MODEL), jnp.float32)
    params = init_params(kp, D_MODEL)

    out, attn = mha_forward(x, params, N_HEADS)
    out = jax.block_until_ready(out)
    attn = jax.block_until_ready(attn)

    ref_out, ref_attn = mha_reference(x, params, N_HEADS)
    assert jnp.allclose(out, ref_out, atol=1e-4, rtol=1e-4)
    assert jnp.allclose(attn, ref_attn, atol=1e-5, rtol=1e-5)

    print("KERNEL_OK")
</pallas_src>

<mosaic_0001>
module attributes {stable_mosaic.version = 11 : i64} {
  func.func @mha_kernel(%arg0: memref<16x32xf32, #tpu.memory_space<vmem>>, %arg1: memref<32x96xf32, #tpu.memory_space<vmem>>, %arg2: memref<1x96xf32, #tpu.memory_space<vmem>>, %arg3: memref<32x32xf32, #tpu.memory_space<vmem>>, %arg4: memref<1x32xf32, #tpu.memory_space<vmem>>, %arg5: memref<16x32xf32, #tpu.memory_space<vmem>>, %arg6: memref<16x32xf32, #tpu.memory_space<vmem>>) attributes {dimension_semantics = [], scalar_prefetch = 0 : i64, scratch_operands = 0 : i64, tpu.core_type = #tpu.core_type<tc>} {
    %c0 = arith.constant 0 : index
    %c0_0 = arith.constant 0 : index
    %0 = vector.load %arg0[%c0, %c0_0] : memref<16x32xf32, #tpu.memory_space<vmem>>, vector<16x32xf32>
    %c0_1 = arith.constant 0 : index
    %c0_2 = arith.constant 0 : index
    %1 = vector.load %arg1[%c0_1, %c0_2] : memref<32x96xf32, #tpu.memory_space<vmem>>, vector<32x96xf32>
    %cst = arith.constant dense<0.000000e+00> : vector<16x96xf32>
    %2 = tpu.matmul %0, %1, %cst {dimension_numbers = #tpu.dot_dimension_numbers<[1], [0], [0], [1], [0, 0, 1, 1], [], []>} : vector<16x32xf32>, vector<32x96xf32>, vector<16x96xf32> -> vector<16x96xf32>
    %c0_3 = arith.constant 0 : index
    %c0_4 = arith.constant 0 : index
    %3 = vector.load %arg2[%c0_3, %c0_4] : memref<1x96xf32, #tpu.memory_space<vmem>>, vector<1x96xf32>
    %4 = vector.broadcast %3 : vector<1x96xf32> to vector<16x96xf32>
    %5 = arith.addf %2, %4 : vector<16x96xf32>
    %6 = vector.extract_strided_slice %5 {offsets = [0, 0], sizes = [16, 32], strides = [1, 1]} : vector<16x96xf32> to vector<16x32xf32>
    %7 = vector.extract_strided_slice %5 {offsets = [0, 32], sizes = [16, 32], strides = [1, 1]} : vector<16x96xf32> to vector<16x32xf32>
    %8 = vector.extract_strided_slice %5 {offsets = [0, 64], sizes = [16, 32], strides = [1, 1]} : vector<16x96xf32> to vector<16x32xf32>
    %9 = vector.extract_strided_slice %6 {offsets = [0, 0], sizes = [8, 32], strides = [1, 1]} : vector<16x32xf32> to vector<8x32xf32>
    %10 = vector.extract_strided_slice %7 {offsets = [0, 0], sizes = [8, 32], strides = [1, 1]} : vector<16x32xf32> to vector<8x32xf32>
    %11 = vector.extract_strided_slice %8 {offsets = [0, 0], sizes = [8, 32], strides = [1, 1]} : vector<16x32xf32> to vector<8x32xf32>
    %12 = vector.extract_strided_slice %9 {offsets = [0, 0], sizes = [8, 8], strides = [1, 1]} : vector<8x32xf32> to vector<8x8xf32>
    %13 = vector.extract_strided_slice %10 {offsets = [0, 0], sizes = [8, 8], strides = [1, 1]} : vector<8x32xf32> to vector<8x8xf32>
    %14 = vector.extract_strided_slice %11 {offsets = [0, 0], sizes = [8, 8], strides = [1, 1]} : vector<8x32xf32> to vector<8x8xf32>
    %cst_5 = arith.constant dense<0.000000e+00> : vector<8x8xf32>
    %15 = tpu.matmul %12, %13, %cst_5 {dimension_numbers = #tpu.dot_dimension_numbers<[1], [1], [0], [0], [0, 0, 1, 0], [], []>} : vector<8x8xf32>, vector<8x8xf32>, vector<8x8xf32> -> vector<8x8xf32>
    %cst_6 = arith.constant dense<0xFF800000> : vector<8xf32>
    %16 = vector.multi_reduction <maximumf>, %15, %cst_6 [1] : vector<8x8xf32> to vector<8xf32>
    %17 = vector.shape_cast %16 : vector<8xf32> to vector<8x1xf32>
    %18 = vector.broadcast %17 : vector<8x1xf32> to vector<8x8xf32>
    %19 = arith.subf %15, %18 : vector<8x8xf32>
    %20 = math.exp %19 : vector<8x8xf32>
    %cst_7 = arith.constant dense<0.000000e+00> : vector<8xf32>
    %21 = vector.multi_reduction <add>, %20, %cst_7 [1] : vector<8x8xf32> to vector<8xf32>
    %22 = vector.shape_cast %21 : vector<8xf32> to vector<8x1xf32>
    %23 = tpu.reciprocal %22 : vector<8x1xf32> -> vector<8x1xf32>
    %24 = vector.broadcast %23 : vector<8x1xf32> to vector<8x8xf32>
    %25 = arith.mulf %20, %24 : vector<8x8xf32>
    %cst_8 = arith.constant dense<0.000000e+00> : vector<8x8xf32>
    %26 = tpu.matmul %25, %14, %cst_8 {dimension_numbers = #tpu.dot_dimension_numbers<[1], [0], [0], [1], [0, 0, 1, 1], [], []>} : vector<8x8xf32>, vector<8x8xf32>, vector<8x8xf32> -> vector<8x8xf32>
    %27 = vector.extract_strided_slice %9 {offsets = [0, 8], sizes = [8, 8], strides = [1, 1]} : vector<8x32xf32> to vector<8x8xf32>
    %28 = vector.extract_strided_slice %10 {offsets = [0, 8], sizes = [8, 8], strides = [1, 1]} : vector<8x32xf32> to vector<8x8xf32>
    %29 = vector.extract_strided_slice %11 {offsets = [0, 8], sizes = [8, 8], strides = [1, 1]} : vector<8x32xf32> to vector<8x8xf32>
    %cst_9 = arith.constant dense<0.000000e+00> : vector<8x8xf32>
    %30 = tpu.matmul %27, %28, %cst_9 {dimension_numbers = #tpu.dot_dimension_numbers<[1], [1], [0], [0], [0, 0, 1, 0], [], []>} : vector<8x8xf32>, vector<8x8xf32>, vector<8x8xf32> -> vector<8x8xf32>
    %cst_10 = arith.constant dense<0xFF800000> : vector<8xf32>
    %31 = vector.multi_reduction <maximumf>, %30, %cst_10 [1] : vector<8x8xf32> to vector<8xf32>
    %32 = vector.shape_cast %31 : vector<8xf32> to vector<8x1xf32>
    %33 = vector.broadcast %32 : vector<8x1xf32> to vector<8x8xf32>
    %34 = arith.subf %30, %33 : vector<8x8xf32>
    %35 = math.exp %34 : vector<8x8xf32>
    %cst_11 = arith.constant dense<0.000000e+00> : vector<8xf32>
    %36 = vector.multi_reduction <add>, %35, %cst_11 [1] : vector<8x8xf32> to vector<8xf32>
    %37 = vector.shape_cast %36 : vector<8xf32> to vector<8x1xf32>
    %38 = tpu.reciprocal %37 : vector<8x1xf32> -> vector<8x1xf32>
    %39 = vector.broadcast %38 : vector<8x1xf32> to vector<8x8xf32>
    %40 = arith.mulf %35, %39 : vector<8x8xf32>
    %cst_12 = arith.constant dense<0.000000e+00> : vector<8x8xf32>
    %41 = tpu.matmul %40, %29, %cst_12 {dimension_numbers = #tpu.dot_dimension_numbers<[1], [0], [0], [1], [0, 0, 1, 1], [], []>} : vector<8x8xf32>, vector<8x8xf32>, vector<8x8xf32> -> vector<8x8xf32>
    %42 = vector.extract_strided_slice %9 {offsets = [0, 16], sizes = [8, 8], strides = [1, 1]} : vector<8x32xf32> to vector<8x8xf32>
    %43 = vector.extract_strided_slice %10 {offsets = [0, 16], sizes = [8, 8], strides = [1, 1]} : vector<8x32xf32> to vector<8x8xf32>
    %44 = vector.extract_strided_slice %11 {offsets = [0, 16], sizes = [8, 8], strides = [1, 1]} : vector<8x32xf32> to vector<8x8xf32>
    %cst_13 = arith.constant dense<0.000000e+00> : vector<8x8xf32>
    %45 = tpu.matmul %42, %43, %cst_13 {dimension_numbers = #tpu.dot_dimension_numbers<[1], [1], [0], [0], [0, 0, 1, 0], [], []>} : vector<8x8xf32>, vector<8x8xf32>, vector<8x8xf32> -> vector<8x8xf32>
    %cst_14 = arith.constant dense<0xFF800000> : vector<8xf32>
    %46 = vector.multi_reduction <maximumf>, %45, %cst_14 [1] : vector<8x8xf32> to vector<8xf32>
    %47 = vector.shape_cast %46 : vector<8xf32> to vector<8x1xf32>
    %48 = vector.broadcast %47 : vector<8x1xf32> to vector<8x8xf32>
    %49 = arith.subf %45, %48 : vector<8x8xf32>
    %50 = math.exp %49 : vector<8x8xf32>
    %cst_15 = arith.constant dense<0.000000e+00> : vector<8xf32>
    %51 = vector.multi_reduction <add>, %50, %cst_15 [1] : vector<8x8xf32> to vector<8xf32>
    %52 = vector.shape_cast %51 : vector<8xf32> to vector<8x1xf32>
    %53 = tpu.reciprocal %52 : vector<8x1xf32> -> vector<8x1xf32>
    %54 = vector.broadcast %53 : vector<8x1xf32> to vector<8x8xf32>
    %55 = arith.mulf %50, %54 : vector<8x8xf32>
    %cst_16 = arith.constant dense<0.000000e+00> : vector<8x8xf32>
    %56 = tpu.matmul %55, %44, %cst_16 {dimension_numbers = #tpu.dot_dimension_numbers<[1], [0], [0], [1], [0, 0, 1, 1], [], []>} : vector<8x8xf32>, vector<8x8xf32>, vector<8x8xf32> -> vector<8x8xf32>
    %57 = vector.extract_strided_slice %9 {offsets = [0, 24], sizes = [8, 8], strides = [1, 1]} : vector<8x32xf32> to vector<8x8xf32>
    %58 = vector.extract_strided_slice %10 {offsets = [0, 24], sizes = [8, 8], strides = [1, 1]} : vector<8x32xf32> to vector<8x8xf32>
    %59 = vector.extract_strided_slice %11 {offsets = [0, 24], sizes = [8, 8], strides = [1, 1]} : vector<8x32xf32> to vector<8x8xf32>
    %cst_17 = arith.constant dense<0.000000e+00> : vector<8x8xf32>
    %60 = tpu.matmul %57, %58, %cst_17 {dimension_numbers = #tpu.dot_dimension_numbers<[1], [1], [0], [0], [0, 0, 1, 0], [], []>} : vector<8x8xf32>, vector<8x8xf32>, vector<8x8xf32> -> vector<8x8xf32>
    %cst_18 = arith.constant dense<0xFF800000> : vector<8xf32>
    %61 = vector.multi_reduction <maximumf>, %60, %cst_18 [1] : vector<8x8xf32> to vector<8xf32>
    %62 = vector.shape_cast %61 : vector<8xf32> to vector<8x1xf32>
    %63 = vector.broadcast %62 : vector<8x1xf32> to vector<8x8xf32>
    %64 = arith.subf %60, %63 : vector<8x8xf32>
    %65 = math.exp %64 : vector<8x8xf32>
    %cst_19 = arith.constant dense<0.000000e+00> : vector<8xf32>
    %66 = vector.multi_reduction <add>, %65, %cst_19 [1] : vector<8x8xf32> to vector<8xf32>
    %67 = vector.shape_cast %66 : vector<8xf32> to vector<8x1xf32>
    %68 = tpu.reciprocal %67 : vector<8x1xf32> -> vector<8x1xf32>
    %69 = vector.broadcast %68 : vector<8x1xf32> to vector<8x8xf32>
    %70 = arith.mulf %65, %69 : vector<8x8xf32>
    %cst_20 = arith.constant dense<0.000000e+00> : vector<8x8xf32>
    %71 = tpu.matmul %70, %59, %cst_20 {dimension_numbers = #tpu.dot_dimension_numbers<[1], [0], [0], [1], [0, 0, 1, 1], [], []>} : vector<8x8xf32>, vector<8x8xf32>, vector<8x8xf32> -> vector<8x8xf32>
    %72 = tpu.concatenate %26, %41, %56, %71 in 1 : vector<8x8xf32>, vector<8x8xf32>, vector<8x8xf32>, vector<8x8xf32> -> vector<8x32xf32>
    %73 = tpu.concatenate %25, %40, %55, %70 in 1 : vector<8x8xf32>, vector<8x8xf32>, vector<8x8xf32>, vector<8x8xf32> -> vector<8x32xf32>
    %74 = vector.extract_strided_slice %6 {offsets = [8, 0], sizes = [8, 32], strides = [1, 1]} : vector<16x32xf32> to vector<8x32xf32>
    %75 = vector.extract_strided_slice %7 {offsets = [8, 0], sizes = [8, 32], strides = [1, 1]} : vector<16x32xf32> to vector<8x32xf32>
    %76 = vector.extract_strided_slice %8 {offsets = [8, 0], sizes = [8, 32], strides = [1, 1]} : vector<16x32xf32> to vector<8x32xf32>
    %77 = vector.extract_strided_slice %74 {offsets = [0, 0], sizes = [8, 8], strides = [1, 1]} : vector<8x32xf32> to vector<8x8xf32>
    %78 = vector.extract_strided_slice %75 {offsets = [0, 0], sizes = [8, 8], strides = [1, 1]} : vector<8x32xf32> to vector<8x8xf32>
    %79 = vector.extract_strided_slice %76 {offsets = [0, 0], sizes = [8, 8], strides = [1, 1]} : vector<8x32xf32> to vector<8x8xf32>
    %cst_21 = arith.constant dense<0.000000e+00> : vector<8x8xf32>
    %80 = tpu.matmul %77, %78, %cst_21 {dimension_numbers = #tpu.dot_dimension_numbers<[1], [1], [0], [0], [0, 0, 1, 0], [], []>} : vector<8x8xf32>, vector<8x8xf32>, vector<8x8xf32> -> vector<8x8xf32>
    %cst_22 = arith.constant dense<0xFF800000> : vector<8xf32>
    %81 = vector.multi_reduction <maximumf>, %80, %cst_22 [1] : vector<8x8xf32> to vector<8xf32>
    %82 = vector.shape_cast %81 : vector<8xf32> to vector<8x1xf32>
    %83 = vector.broadcast %82 : vector<8x1xf32> to vector<8x8xf32>
    %84 = arith.subf %80, %83 : vector<8x8xf32>
    %85 = math.exp %84 : vector<8x8xf32>
    %cst_23 = arith.constant dense<0.000000e+00> : vector<8xf32>
    %86 = vector.multi_reduction <add>, %85, %cst_23 [1] : vector<8x8xf32> to vector<8xf32>
    %87 = vector.shape_cast %86 : vector<8xf32> to vector<8x1xf32>
    %88 = tpu.reciprocal %87 : vector<8x1xf32> -> vector<8x1xf32>
    %89 = vector.broadcast %88 : vector<8x1xf32> to vector<8x8xf32>
    %90 = arith.mulf %85, %89 : vector<8x8xf32>
    %cst_24 = arith.constant dense<0.000000e+00> : vector<8x8xf32>
    %91 = tpu.matmul %90, %79, %cst_24 {dimension_numbers = #tpu.dot_dimension_numbers<[1], [0], [0], [1], [0, 0, 1, 1], [], []>} : vector<8x8xf32>, vector<8x8xf32>, vector<8x8xf32> -> vector<8x8xf32>
    %92 = vector.extract_strided_slice %74 {offsets = [0, 8], sizes = [8, 8], strides = [1, 1]} : vector<8x32xf32> to vector<8x8xf32>
    %93 = vector.extract_strided_slice %75 {offsets = [0, 8], sizes = [8, 8], strides = [1, 1]} : vector<8x32xf32> to vector<8x8xf32>
    %94 = vector.extract_strided_slice %76 {offsets = [0, 8], sizes = [8, 8], strides = [1, 1]} : vector<8x32xf32> to vector<8x8xf32>
    %cst_25 = arith.constant dense<0.000000e+00> : vector<8x8xf32>
    %95 = tpu.matmul %92, %93, %cst_25 {dimension_numbers = #tpu.dot_dimension_numbers<[1], [1], [0], [0], [0, 0, 1, 0], [], []>} : vector<8x8xf32>, vector<8x8xf32>, vector<8x8xf32> -> vector<8x8xf32>
    %cst_26 = arith.constant dense<0xFF800000> : vector<8xf32>
    %96 = vector.multi_reduction <maximumf>, %95, %cst_26 [1] : vector<8x8xf32> to vector<8xf32>
    %97 = vector.shape_cast %96 : vector<8xf32> to vector<8x1xf32>
    %98 = vector.broadcast %97 : vector<8x1xf32> to vector<8x8xf32>
    %99 = arith.subf %95, %98 : vector<8x8xf32>
    %100 = math.exp %99 : vector<8x8xf32>
    %cst_27 = arith.constant dense<0.000000e+00> : vector<8xf32>
    %101 = vector.multi_reduction <add>, %100, %cst_27 [1] : vector<8x8xf32> to vector<8xf32>
    %102 = vector.shape_cast %101 : vector<8xf32> to vector<8x1xf32>
    %103 = tpu.reciprocal %102 : vector<8x1xf32> -> vector<8x1xf32>
    %104 = vector.broadcast %103 : vector<8x1xf32> to vector<8x8xf32>
    %105 = arith.mulf %100, %104 : vector<8x8xf32>
    %cst_28 = arith.constant dense<0.000000e+00> : vector<8x8xf32>
    %106 = tpu.matmul %105, %94, %cst_28 {dimension_numbers = #tpu.dot_dimension_numbers<[1], [0], [0], [1], [0, 0, 1, 1], [], []>} : vector<8x8xf32>, vector<8x8xf32>, vector<8x8xf32> -> vector<8x8xf32>
    %107 = vector.extract_strided_slice %74 {offsets = [0, 16], sizes = [8, 8], strides = [1, 1]} : vector<8x32xf32> to vector<8x8xf32>
    %108 = vector.extract_strided_slice %75 {offsets = [0, 16], sizes = [8, 8], strides = [1, 1]} : vector<8x32xf32> to vector<8x8xf32>
    %109 = vector.extract_strided_slice %76 {offsets = [0, 16], sizes = [8, 8], strides = [1, 1]} : vector<8x32xf32> to vector<8x8xf32>
    %cst_29 = arith.constant dense<0.000000e+00> : vector<8x8xf32>
    %110 = tpu.matmul %107, %108, %cst_29 {dimension_numbers = #tpu.dot_dimension_numbers<[1], [1], [0], [0], [0, 0, 1, 0], [], []>} : vector<8x8xf32>, vector<8x8xf32>, vector<8x8xf32> -> vector<8x8xf32>
    %cst_30 = arith.constant dense<0xFF800000> : vector<8xf32>
    %111 = vector.multi_reduction <maximumf>, %110, %cst_30 [1] : vector<8x8xf32> to vector<8xf32>
    %112 = vector.shape_cast %111 : vector<8xf32> to vector<8x1xf32>
    %113 = vector.broadcast %112 : vector<8x1xf32> to vector<8x8xf32>
    %114 = arith.subf %110, %113 : vector<8x8xf32>
    %115 = math.exp %114 : vector<8x8xf32>
    %cst_31 = arith.constant dense<0.000000e+00> : vector<8xf32>
    %116 = vector.multi_reduction <add>, %115, %cst_31 [1] : vector<8x8xf32> to vector<8xf32>
    %117 = vector.shape_cast %116 : vector<8xf32> to vector<8x1xf32>
    %118 = tpu.reciprocal %117 : vector<8x1xf32> -> vector<8x1xf32>
    %119 = vector.broadcast %118 : vector<8x1xf32> to vector<8x8xf32>
    %120 = arith.mulf %115, %119 : vector<8x8xf32>
    %cst_32 = arith.constant dense<0.000000e+00> : vector<8x8xf32>
    %121 = tpu.matmul %120, %109, %cst_32 {dimension_numbers = #tpu.dot_dimension_numbers<[1], [0], [0], [1], [0, 0, 1, 1], [], []>} : vector<8x8xf32>, vector<8x8xf32>, vector<8x8xf32> -> vector<8x8xf32>
    %122 = vector.extract_strided_slice %74 {offsets = [0, 24], sizes = [8, 8], strides = [1, 1]} : vector<8x32xf32> to vector<8x8xf32>
    %123 = vector.extract_strided_slice %75 {offsets = [0, 24], sizes = [8, 8], strides = [1, 1]} : vector<8x32xf32> to vector<8x8xf32>
    %124 = vector.extract_strided_slice %76 {offsets = [0, 24], sizes = [8, 8], strides = [1, 1]} : vector<8x32xf32> to vector<8x8xf32>
    %cst_33 = arith.constant dense<0.000000e+00> : vector<8x8xf32>
    %125 = tpu.matmul %122, %123, %cst_33 {dimension_numbers = #tpu.dot_dimension_numbers<[1], [1], [0], [0], [0, 0, 1, 0], [], []>} : vector<8x8xf32>, vector<8x8xf32>, vector<8x8xf32> -> vector<8x8xf32>
    %cst_34 = arith.constant dense<0xFF800000> : vector<8xf32>
    %126 = vector.multi_reduction <maximumf>, %125, %cst_34 [1] : vector<8x8xf32> to vector<8xf32>
    %127 = vector.shape_cast %126 : vector<8xf32> to vector<8x1xf32>
    %128 = vector.broadcast %127 : vector<8x1xf32> to vector<8x8xf32>
    %129 = arith.subf %125, %128 : vector<8x8xf32>
    %130 = math.exp %129 : vector<8x8xf32>
    %cst_35 = arith.constant dense<0.000000e+00> : vector<8xf32>
    %131 = vector.multi_reduction <add>, %130, %cst_35 [1] : vector<8x8xf32> to vector<8xf32>
    %132 = vector.shape_cast %131 : vector<8xf32> to vector<8x1xf32>
    %133 = tpu.reciprocal %132 : vector<8x1xf32> -> vector<8x1xf32>
    %134 = vector.broadcast %133 : vector<8x1xf32> to vector<8x8xf32>
    %135 = arith.mulf %130, %134 : vector<8x8xf32>
    %cst_36 = arith.constant dense<0.000000e+00> : vector<8x8xf32>
    %136 = tpu.matmul %135, %124, %cst_36 {dimension_numbers = #tpu.dot_dimension_numbers<[1], [0], [0], [1], [0, 0, 1, 1], [], []>} : vector<8x8xf32>, vector<8x8xf32>, vector<8x8xf32> -> vector<8x8xf32>
    %137 = tpu.concatenate %91, %106, %121, %136 in 1 : vector<8x8xf32>, vector<8x8xf32>, vector<8x8xf32>, vector<8x8xf32> -> vector<8x32xf32>
    %138 = tpu.concatenate %90, %105, %120, %135 in 1 : vector<8x8xf32>, vector<8x8xf32>, vector<8x8xf32>, vector<8x8xf32> -> vector<8x32xf32>
    %139 = tpu.concatenate %72, %137 in 0 : vector<8x32xf32>, vector<8x32xf32> -> vector<16x32xf32>
    %c0_37 = arith.constant 0 : index
    %c0_38 = arith.constant 0 : index
    %140 = vector.load %arg3[%c0_37, %c0_38] : memref<32x32xf32, #tpu.memory_space<vmem>>, vector<32x32xf32>
    %cst_39 = arith.constant dense<0.000000e+00> : vector<16x32xf32>
    %141 = tpu.matmul %139, %140, %cst_39 {dimension_numbers = #tpu.dot_dimension_numbers<[1], [0], [0], [1], [0, 0, 1, 1], [], []>} : vector<16x32xf32>, vector<32x32xf32>, vector<16x32xf32> -> vector<16x32xf32>
    %c0_40 = arith.constant 0 : index
    %c0_41 = arith.constant 0 : index
    %142 = vector.load %arg4[%c0_40, %c0_41] : memref<1x32xf32, #tpu.memory_space<vmem>>, vector<1x32xf32>
    %143 = vector.broadcast %142 : vector<1x32xf32> to vector<16x32xf32>
    %144 = arith.addf %141, %143 : vector<16x32xf32>
    %c0_42 = arith.constant 0 : index
    %c0_43 = arith.constant 0 : index
    %145 = vector.load %arg5[%c0_42, %c0_43] : memref<16x32xf32, #tpu.memory_space<vmem>>, vector<16x32xf32>
    tpu.vector_store %arg5[%c0_42, %c0_43], %144 {strides = array<i32>} : memref<16x32xf32, #tpu.memory_space<vmem>>, vector<16x32xf32>,
    %146 = tpu.concatenate %73, %138 in 0 : vector<8x32xf32>, vector<8x32xf32> -> vector<16x32xf32>
    %c0_44 = arith.constant 0 : index
    %c0_45 = arith.constant 0 : index
    %147 = vector.load %arg6[%c0_44, %c0_45] : memref<16x32xf32, #tpu.memory_space<vmem>>, vector<16x32xf32>
    tpu.vector_store %arg6[%c0_44, %c0_45], %146 {strides = array<i32>} : memref<16x32xf32, #tpu.memory_space<vmem>>, vector<16x32xf32>,
    return
  }
}

</mosaic_0001>

<llo_original>
// kernel: tpu_custom_call.1
$region0: #{tpu_custom_call.1}
  #allocation0 [shape = 'u32[]', space=smem, size = 0x4, offset = 0x4, fixed_abs, tag = 'smem constant byte address 0x4 - core index']
  #allocation1 [shape = 'u32[72,128]{1,0:T(1,128)}', space=vmem, size = 0x9000, scoped, tag = 'internal scratch']
  %s0 = inlined_call_operand.hbm [shape: f32[16,32], index: 0, kind: input, shape index: {}]
  %s1 = inlined_call_operand.hbm [shape: f32[32,96], index: 1, kind: input, shape index: {}]
  %s2 = inlined_call_operand.vmem [shape: f32[1,96], index: 2, kind: input, shape index: {}]
  %s3 = inlined_call_operand.hbm [shape: f32[32,32], index: 3, kind: input, shape index: {}]
  %s4 = inlined_call_operand.vmem [shape: f32[1,32], index: 4, kind: input, shape index: {}]
  %s5 = inlined_call_operand.hbm [shape: f32[16,32], index: 5, kind: output, shape index: {0}]
  %s6 = inlined_call_operand.hbm [shape: f32[16,32], index: 6, kind: output, shape index: {1}]
  %7 = xla_tuple %s5, %s6
  %s8 = sld [smem:[#allocation0]]
  $region50: #{tpu_custom_call.1} parent=0
    _
  %s10 = ssub.s32 1, %s8
  %s11 = scalar_select 0, %s10, %s8
  $region1: #{tpu_custom_call.1} parent=0
    #allocation2 [shape = 'u8[8192]{0}', space=vmem, size = 0x2000, scoped, tag = 'input window, operand 0, single buffered']
    #allocation3 [shape = 's32[1]{0}', space=sflag, size = 0x4, scoped, tag = 'scoped memory for tpu_custom_call.1']
    #allocation4 [shape = 's32[1]{0}', space=sflag, size = 0x4, scoped, tag = 'scoped memory for tpu_custom_call.1']
    #allocation5 [shape = 'u8[16384]{0}', space=vmem, size = 0x4000, scoped, tag = 'input window, operand 1, single buffered']
    #allocation6 [shape = 's32[1]{0}', space=sflag, size = 0x4, scoped, tag = 'scoped memory for tpu_custom_call.1']
    #allocation7 [shape = 'u8[16384]{0}', space=vmem, size = 0x4000, scoped, tag = 'input window, operand 3, single buffered']
    #allocation8 [shape = 'u8[8192]{0}', space=vmem, size = 0x2000, scoped, tag = 'output window, operand 0, single buffered']
    #allocation9 [shape = 'u8[8192]{0}', space=vmem, size = 0x2000, scoped, tag = 'output window, operand 1, single buffered']
    #allocation10 [shape = 's32[1]{0}', space=sflag, size = 0x4, scoped, tag = 'scoped memory for tpu_custom_call.1']
    %12 = vsyncpa [#allocation3], 0
    %13 = vsyncpa [#allocation6], 0
    %14 = vsyncpa [#allocation4], 0
    %15 = vsyncpa [#allocation10], 0
    // Predicated region
    $region2: #{tpu_custom_call.1} parent=1 // pred_check
      _
    $region3: #{tpu_custom_call.1} parent=1 // pred_check_branch
      %17 = sbr.rel (0) target = $region5
    $region4: #{tpu_custom_call.1} parent=1 // pred_region
      %19 = vsyncadd [#allocation3], 0
      %s20 = sshll.u32 %s0, 4
      %s21 = int_to_ptr.hbm [resolvable:$true] %s20
      %s22 = sshll.u32 [#allocation2], 4
      %s23 = int_to_ptr.vmem [resolvable:$true] %s22
      %28 = dma.hbm_to_vmem [thread:$0]  %s21, 256, %s23, [#allocation3], 128, 128, 8
    $region5: #{tpu_custom_call.1} parent=1 // pred_fallthru
      _
    // Predicated region
    $region6: #{tpu_custom_call.1} parent=1 // pred_check
      _
    $region7: #{tpu_custom_call.1} parent=1 // pred_check_branch
      %30 = sbr.rel (0) target = $region9
    $region8: #{tpu_custom_call.1} parent=1 // pred_region
      %32 = vsyncadd [#allocation6], 0
      %s33 = sshll.u32 %s1, 4
      %s34 = int_to_ptr.hbm [resolvable:$true] %s33
      %s35 = sshll.u32 [#allocation5], 4
      %s36 = int_to_ptr.vmem [resolvable:$true] %s35
      %41 = dma.hbm_to_vmem [thread:$0]  %s34, 512, %s36, [#allocation6], 128, 128, 8
    $region9: #{tpu_custom_call.1} parent=1 // pred_fallthru
      _
    // Predicated region
    $region10: #{tpu_custom_call.1} parent=1 // pred_check
      _
    $region11: #{tpu_custom_call.1} parent=1 // pred_check_branch
      %43 = sbr.rel (0) target = $region13
    $region12: #{tpu_custom_call.1} parent=1 // pred_region
      _
    $region13: #{tpu_custom_call.1} parent=1 // pred_fallthru
      _
    // Predicated region
    $region14: #{tpu_custom_call.1} parent=1 // pred_check
      _
    $region15: #{tpu_custom_call.1} parent=1 // pred_check_branch
      %45 = sbr.rel (0) target = $region17
    $region16: #{tpu_custom_call.1} parent=1 // pred_region
      %47 = vsyncadd [#allocation6], 0
      %s48 = sshll.u32 %s3, 4
      %s49 = int_to_ptr.hbm [resolvable:$true] %s48
      %s50 = sshll.u32 [#allocation7], 4
      %s51 = int_to_ptr.vmem [resolvable:$true] %s50
      %56 = dma.hbm_to_vmem [thread:$0]  %s49, 512, %s51, [#allocation6], 128, 128, 8
    $region17: #{tpu_custom_call.1} parent=1 // pred_fallthru
      _
    // Predicated region
    $region18: #{tpu_custom_call.1} parent=1 // pred_check
      _
    $region19: #{tpu_custom_call.1} parent=1 // pred_check_branch
      %58 = sbr.rel (0) target = $region21
    $region20: #{tpu_custom_call.1} parent=1 // pred_region
      _
    $region21: #{tpu_custom_call.1} parent=1 // pred_fallthru
      _
    // Predicated region
    $region22: #{tpu_custom_call.1} parent=1 // pred_check
      _
    $region23: #{tpu_custom_call.1} parent=1 // pred_check_branch
      %60 = sbr.rel (0) target = $region25
    $region24: #{tpu_custom_call.1} parent=1 // pred_region
      %62 = dma.done [#allocation3], 256
    $region25: #{tpu_custom_call.1} parent=1 // pred_fallthru
      _
    // Predicated region
    $region26: #{tpu_custom_call.1} parent=1 // pred_check
      _
    $region27: #{tpu_custom_call.1} parent=1 // pred_check_branch
      %64 = sbr.rel (0) target = $region29
    $region28: #{tpu_custom_call.1} parent=1 // pred_region
      %66 = dma.done [#allocation6], 512
    $region29: #{tpu_custom_call.1} parent=1 // pred_fallthru
      _
    // Predicated region
    $region30: #{tpu_custom_call.1} parent=1 // pred_check
      _
    $region31: #{tpu_custom_call.1} parent=1 // pred_check_branch
      %68 = sbr.rel (0) target = $region33
    $region32: #{tpu_custom_call.1} parent=1 // pred_region
      %70 = dma.done [#allocation6], 512
    $region33: #{tpu_custom_call.1} parent=1 // pred_fallthru
      _
    %v71 = vld [vmem:[#allocation2] sm:$0xff]
    %v72 = vld [vmem:[#allocation2 + $0x8] sm:$0xff]
    %v73 = vld [vmem:[#allocation5] sm:$0xff]
    %v74 = vld [vmem:[#allocation5 + $0x8] sm:$0xff]
    %v75 = vld [vmem:[#allocation5 + $0x10] sm:$0xff]
    %v76 = vld [vmem:[#allocation5 + $0x18] sm:$0xff]
    %v77 = vld [vmem:[%s2] sm:$0x1]
    %v79 = vperm.slane %v77, 0
    %vm81 = vcmask 261120
    %v83 = vsel %vm81, %v71, 0
    %v86 = vsel %vm81, %v72, 0
    %88 = vmatpush.msra.mxu0 0.0
    %89 = vmatpush.msra.mxu0 0.0
    %90 = vmatpush.msra.mxu0 0.0
    %91 = vmatpush.msra.mxu0 0.0
    %92 = vmatpush.msra.mxu0 0.0
    %93 = vmatpush.msra.mxu0 0.0
    %94 = vmatpush.msra.mxu0 0.0
    %95 = vmatpush.msra.mxu0 0.0
    %96 = vmatpush.msra.mxu0 0.0
    %97 = vmatpush.msra.mxu0 0.0
    %98 = vmatpush.msra.mxu0 0.0
    %99 = vmatpush.msra.mxu0 0.0
    %100 = vmatpush.msra.mxu0 %v76
    %101 = vmatpush.msra.mxu0 %v75
    %102 = vmatpush.msra.mxu0 %v74
    %103 = vmatpush.msra.mxu0 %v73
    %104 = vmatmul.f32.gmra.mxu0 %v83
    %v105 = vpop.f32.mrf.mxu0
    %v106 = vadd.f32 %v79, %v105
    %107 = vmatmul.f32.gmra.mxu0 %v86
    %v108 = vpop.f32.mrf.mxu0
    %v109 = vadd.f32 %v79, %v108
    %110 = vdwg.mxu0
    %112 = vrot.lane.b32.xlu0 %v106, 96
    %v113 = vpop.permute.xlu0 %112
    %vm114 = vcmask 64512
    %v115 = vsel %vm114, %v106, 0
    %v117 = vsel %vm114, %v113, 0
    %119 = vmatpush.xpose.msra.mxu0 0.0
    %120 = vmatpush.xpose.msra.mxu0 0.0
    %121 = vmatpush.xpose.msra.mxu0 0.0
    %122 = vmatpush.xpose.msra.mxu0 0.0
    %123 = vmatpush.xpose.msra.mxu0 0.0
    %124 = vmatpush.xpose.msra.mxu0 0.0
    %125 = vmatpush.xpose.msra.mxu0 0.0
    %126 = vmatpush.xpose.msra.mxu0 0.0
    %127 = vmatpush.xpose.msra.mxu0 0.0
    %128 = vmatpush.xpose.msra.mxu0 0.0
    %129 = vmatpush.xpose.msra.mxu0 0.0
    %130 = vmatpush.xpose.msra.mxu0 0.0
    %131 = vmatpush.xpose.msra.mxu0 0.0
    %132 = vmatpush.xpose.msra.mxu0 0.0
    %133 = vmatpush.xpose.msra.mxu0 0.0
    %134 = vmatpush.xpose.msra.mxu0 %v117
    %135 = vmatmul.f32.gmra.mxu0 %v115
    %v136 = vpop.f32.mrf.mxu0
    %v137 = vadd.f32 0.0, %v136
    %138 = vdwg.mxu0
    %v139 = vsel %vm114, %v137, -inf
    %140 = vmax.xlane.f32.xlu0 %v139
    %v141 = vpop.xlane.xlu0 %140
    %v142 = vsub.f32 %v137, %v141
    %v143 = vmul.f32 %v142, 1.442695
    %v144 = vpow.pop %v143
    %v145 = vsel %vm114, %v144, 0.0
    %146 = vadd.xlane.f32.xlu0 %v145
    %v147 = vpop.xlane.xlu0 %146
    %v148 = vrcp.pop %v147
    %v149 = vmul.f32 %v147, %v148
    %v150 = vsub.f32 1.0, %v149
    %v151 = vmul.f32 %v148, %v150
    %v152 = vadd.f32 %v148, %v151
    %vm153 = vweird.f32 %v147
    %vm154 = vweird.f32 %v148
    %vm155 = vmor %vm153, %vm154
    %v156 = vsel %vm155, %v148, %v152
    %v157 = vand.u32 2147483647, %v147
    %vm158 = vcmp.eq.f32.partialorder %v157, 8.507059e+37
    %v159 = vand.u32 %v147, 2147483648
    %v160 = vor.u32 1.1754944e-38, %v159
    %v161 = vsel %vm158, %v160, %v156
    %v162 = vmul.f32 %v144, %v161
    %163 = vrot.lane.b32.xlu0 %v106, 64
    %v164 = vpop.permute.xlu0 %163
    %v167 = vsel %vm114, %v162, 0
    %169 = vmatpush.msra.mxu0 0.0
    %170 = vmatpush.msra.mxu0 0.0
    %171 = vmatpush.msra.mxu0 0.0
    %172 = vmatpush.msra.mxu0 0.0
    %173 = vmatpush.msra.mxu0 0.0
    %174 = vmatpush.msra.mxu0 0.0
    %175 = vmatpush.msra.mxu0 0.0
    %176 = vmatpush.msra.mxu0 0.0
    %177 = vmatpush.msra.mxu0 0.0
    %178 = vmatpush.msra.mxu0 0.0
    %179 = vmatpush.msra.mxu0 0.0
    %180 = vmatpush.msra.mxu0 0.0
    %181 = vmatpush.msra.mxu0 0.0
    %182 = vmatpush.msra.mxu0 0.0
    %183 = vmatpush.msra.mxu0 0.0
    %184 = vmatpush.msra.mxu0 %v164
    %185 = vmatmul.f32.gmra.mxu0 %v167
    %v186 = vpop.f32.mrf.mxu0
    %v187 = vadd.f32 0.0, %v186
    %188 = vdwg.mxu0
    %189 = vrot.lane.b32.xlu0 %v106, 120
    %v190 = vpop.permute.xlu0 %189
    %191 = vrot.lane.b32.xlu0 %v106, 88
    %v192 = vpop.permute.xlu0 %191
    %v193 = vsel %vm114, %v190, 0
    %v195 = vsel %vm114, %v192, 0
    %197 = vmatpush.xpose.msra.mxu0 0.0
    %198 = vmatpush.xpose.msra.mxu0 0.0
    %199 = vmatpush.xpose.msra.mxu0 0.0
    %200 = vmatpush.xpose.msra.mxu0 0.0
    %201 = vmatpush.xpose.msra.mxu0 0.0
    %202 = vmatpush.xpose.msra.mxu0 0.0
    %203 = vmatpush.xpose.msra.mxu0 0.0
    %204 = vmatpush.xpose.msra.mxu0 0.0
    %205 = vmatpush.xpose.msra.mxu0 0.0
    %206 = vmatpush.xpose.msra.mxu0 0.0
    %207 = vmatpush.xpose.msra.mxu0 0.0
    %208 = vmatpush.xpose.msra.mxu0 0.0
    %209 = vmatpush.xpose.msra.mxu0 0.0
    %210 = vmatpush.xpose.msra.mxu0 0.0
    %211 = vmatpush.xpose.msra.mxu0 0.0
    %212 = vmatpush.xpose.msra.mxu0 %v195
    %213 = vmatmul.f32.gmra.mxu0 %v193
    %v214 = vpop.f32.mrf.mxu0
    %v215 = vadd.f32 0.0, %v214
    %216 = vdwg.mxu0
    %v217 = vsel %vm114, %v215, -inf
    %218 = vmax.xlane.f32.xlu0 %v217
    %v219 = vpop.xlane.xlu0 %218
    %v220 = vsub.f32 %v215, %v219
    %v221 = vmul.f32 %v220, 1.442695
    %v222 = vpow.pop %v221
    %v223 = vsel %vm114, %v222, 0.0
    %224 = vadd.xlane.f32.xlu0 %v223
    %v225 = vpop.xlane.xlu0 %224
    %v226 = vrcp.pop %v225
    %v227 = vmul.f32 %v225, %v226
    %v228 = vsub.f32 1.0, %v227
    %v229 = vmul.f32 %v226, %v228
    %v230 = vadd.f32 %v226, %v229
    %vm231 = vweird.f32 %v225
    %vm232 = vweird.f32 %v226
    %vm233 = vmor %vm231, %vm232
    %v234 = vsel %vm233, %v226, %v230
    %v235 = vand.u32 2147483647, %v225
    %vm236 = vcmp.eq.f32.partialorder %v235, 8.507059e+37
    %v237 = vand.u32 %v225, 2147483648
    %v238 = vor.u32 1.1754944e-38, %v237
    %v239 = vsel %vm236, %v238, %v234
    %v240 = vmul.f32 %v222, %v239
    %241 = vrot.lane.b32.xlu0 %v106, 56
    %v242 = vpop.permute.xlu0 %241
    %v245 = vsel %vm114, %v240, 0
    %247 = vmatpush.msra.mxu0 0.0
    %248 = vmatpush.msra.mxu0 0.0
    %249 = vmatpush.msra.mxu0 0.0
    %250 = vmatpush.msra.mxu0 0.0
    %251 = vmatpush.msra.mxu0 0.0
    %252 = vmatpush.msra.mxu0 0.0
    %253 = vmatpush.msra.mxu0 0.0
    %254 = vmatpush.msra.mxu0 0.0
    %255 = vmatpush.msra.mxu0 0.0
    %256 = vmatpush.msra.mxu0 0.0
    %257 = vmatpush.msra.mxu0 0.0
    %258 = vmatpush.msra.mxu0 0.0
    %259 = vmatpush.msra.mxu0 0.0
    %260 = vmatpush.msra.mxu0 0.0
    %261 = vmatpush.msra.mxu0 0.0
    %262 = vmatpush.msra.mxu0 %v242
    %263 = vmatmul.f32.gmra.mxu0 %v245
    %v264 = vpop.f32.mrf.mxu0
    %v265 = vadd.f32 0.0, %v264
    %266 = vdwg.mxu0
    %267 = vrot.lane.b32.xlu0 %v106, 112
    %v268 = vpop.permute.xlu0 %267
    %269 = vrot.lane.b32.xlu0 %v106, 80
    %v270 = vpop.permute.xlu0 %269
    %v271 = vsel %vm114, %v268, 0
    %v273 = vsel %vm114, %v270, 0
    %275 = vmatpush.xpose.msra.mxu0 0.0
    %276 = vmatpush.xpose.msra.mxu0 0.0
    %277 = vmatpush.xpose.msra.mxu0 0.0
    %278 = vmatpush.xpose.msra.mxu0 0.0
    %279 = vmatpush.xpose.msra.mxu0 0.0
    %280 = vmatpush.xpose.msra.mxu0 0.0
    %281 = vmatpush.xpose.msra.mxu0 0.0
    %282 = vmatpush.xpose.msra.mxu0 0.0
    %283 = vmatpush.xpose.msra.mxu0 0.0
    %284 = vmatpush.xpose.msra.mxu0 0.0
    %285 = vmatpush.xpose.msra.mxu0 0.0
    %286 = vmatpush.xpose.msra.mxu0 0.0
    %287 = vmatpush.xpose.msra.mxu0 0.0
    %288 = vmatpush.xpose.msra.mxu0 0.0
    %289 = vmatpush.xpose.msra.mxu0 0.0
    %290 = vmatpush.xpose.msra.mxu0 %v273
    %291 = vmatmul.f32.gmra.mxu0 %v271
    %v292 = vpop.f32.mrf.mxu0
    %v293 = vadd.f32 0.0, %v292
    %294 = vdwg.mxu0
    %v295 = vsel %vm114, %v293, -inf
    %296 = vmax.xlane.f32.xlu0 %v295
    %v297 = vpop.xlane.xlu0 %296
    %v298 = vsub.f32 %v293, %v297
    %v299 = vmul.f32 %v298, 1.442695
    %v300 = vpow.pop %v299
    %v301 = vsel %vm114, %v300, 0.0
    %302 = vadd.xlane.f32.xlu0 %v301
    %v303 = vpop.xlane.xlu0 %302
    %v304 = vrcp.pop %v303
    %v305 = vmul.f32 %v303, %v304
    %v306 = vsub.f32 1.0, %v305
    %v307 = vmul.f32 %v304, %v306
    %v308 = vadd.f32 %v304, %v307
    %vm309 = vweird.f32 %v303
    %vm310 = vweird.f32 %v304
    %vm311 = vmor %vm309, %vm310
    %v312 = vsel %vm311, %v304, %v308
    %v313 = vand.u32 2147483647, %v303
    %vm314 = vcmp.eq.f32.partialorder %v313, 8.507059e+37
    %v315 = vand.u32 %v303, 2147483648
    %v316 = vor.u32 1.1754944e-38, %v315
    %v317 = vsel %vm314, %v316, %v312
    %v318 = vmul.f32 %v300, %v317
    %319 = vrot.lane.b32.xlu0 %v106, 48
    %v320 = vpop.permute.xlu0 %319
    %v323 = vsel %vm114, %v318, 0
    %325 = vmatpush.msra.mxu0 0.0
    %326 = vmatpush.msra.mxu0 0.0
    %327 = vmatpush.msra.mxu0 0.0
    %328 = vmatpush.msra.mxu0 0.0
    %329 = vmatpush.msra.mxu0 0.0
    %330 = vmatpush.msra.mxu0 0.0
    %331 = vmatpush.msra.mxu0 0.0
    %332 = vmatpush.msra.mxu0 0.0
    %333 = vmatpush.msra.mxu0 0.0
    %334 = vmatpush.msra.mxu0 0.0
    %335 = vmatpush.msra.mxu0 0.0
    %336 = vmatpush.msra.mxu0 0.0
    %337 = vmatpush.msra.mxu0 0.0
    %338 = vmatpush.msra.mxu0 0.0
    %339 = vmatpush.msra.mxu0 0.0
    %340 = vmatpush.msra.mxu0 %v320
    %341 = vmatmul.f32.gmra.mxu0 %v323
    %v342 = vpop.f32.mrf.mxu0
    %v343 = vadd.f32 0.0, %v342
    %344 = vdwg.mxu0
    %345 = vrot.lane.b32.xlu0 %v106, 104
    %v346 = vpop.permute.xlu0 %345
    %347 = vrot.lane.b32.xlu0 %v106, 72
    %v348 = vpop.permute.xlu0 %347
    %v349 = vsel %vm114, %v346, 0
    %v351 = vsel %vm114, %v348, 0
    %353 = vmatpush.xpose.msra.mxu0 0.0
    %354 = vmatpush.xpose.msra.mxu0 0.0
    %355 = vmatpush.xpose.msra.mxu0 0.0
    %356 = vmatpush.xpose.msra.mxu0 0.0
    %357 = vmatpush.xpose.msra.mxu0 0.0
    %358 = vmatpush.xpose.msra.mxu0 0.0
    %359 = vmatpush.xpose.msra.mxu0 0.0
    %360 = vmatpush.xpose.msra.mxu0 0.0
    %361 = vmatpush.xpose.msra.mxu0 0.0
    %362 = vmatpush.xpose.msra.mxu0 0.0
    %363 = vmatpush.xpose.msra.mxu0 0.0
    %364 = vmatpush.xpose.msra.mxu0 0.0
    %365 = vmatpush.xpose.msra.mxu0 0.0
    %366 = vmatpush.xpose.msra.mxu0 0.0
    %367 = vmatpush.xpose.msra.mxu0 0.0
    %368 = vmatpush.xpose.msra.mxu0 %v351
    %369 = vmatmul.f32.gmra.mxu0 %v349
    %v370 = vpop.f32.mrf.mxu0
    %v371 = vadd.f32 0.0, %v370
    %372 = vdwg.mxu0
    %v373 = vsel %vm114, %v371, -inf
    %374 = vmax.xlane.f32.xlu0 %v373
    %v375 = vpop.xlane.xlu0 %374
    %v376 = vsub.f32 %v371, %v375
    %v377 = vmul.f32 %v376, 1.442695
    %v378 = vpow.pop %v377
    %v379 = vsel %vm114, %v378, 0.0
    %380 = vadd.xlane.f32.xlu0 %v379
    %v381 = vpop.xlane.xlu0 %380
    %v382 = vrcp.pop %v381
    %v383 = vmul.f32 %v381, %v382
    %v384 = vsub.f32 1.0, %v383
    %v385 = vmul.f32 %v382, %v384
    %v386 = vadd.f32 %v382, %v385
    %vm387 = vweird.f32 %v381
    %vm388 = vweird.f32 %v382
    %vm389 = vmor %vm387, %vm388
    %v390 = vsel %vm389, %v382, %v386
    %v391 = vand.u32 2147483647, %v381
    %vm392 = vcmp.eq.f32.partialorder %v391, 8.507059e+37
    %v393 = vand.u32 %v381, 2147483648
    %v394 = vor.u32 1.1754944e-38, %v393
    %v395 = vsel %vm392, %v394, %v390
    %v396 = vmul.f32 %v378, %v395
    %397 = vrot.lane.b32.xlu0 %v106, 40
    %v398 = vpop.permute.xlu0 %397
    %v401 = vsel %vm114, %v396, 0
    %403 = vmatpush.msra.mxu0 0.0
    %404 = vmatpush.msra.mxu0 0.0
    %405 = vmatpush.msra.mxu0 0.0
    %406 = vmatpush.msra.mxu0 0.0
    %407 = vmatpush.msra.mxu0 0.0
    %408 = vmatpush.msra.mxu0 0.0
    %409 = vmatpush.msra.mxu0 0.0
    %410 = vmatpush.msra.mxu0 0.0
    %411 = vmatpush.msra.mxu0 0.0
    %412 = vmatpush.msra.mxu0 0.0
    %413 = vmatpush.msra.mxu0 0.0
    %414 = vmatpush.msra.mxu0 0.0
    %415 = vmatpush.msra.mxu0 0.0
    %416 = vmatpush.msra.mxu0 0.0
    %417 = vmatpush.msra.mxu0 0.0
    %418 = vmatpush.msra.mxu0 %v398
    %419 = vmatmul.f32.gmra.mxu0 %v401
    %v420 = vpop.f32.mrf.mxu0
    %v421 = vadd.f32 0.0, %v420
    %422 = vdwg.mxu0
    %424 = vrot.lane.b32.xlu0 %v265, 8
    %v425 = vpop.permute.xlu0 %424
    %428 = vrot.lane.b32.xlu0 %v343, 16
    %v429 = vpop.permute.xlu0 %428
    %432 = vrot.lane.b32.xlu0 %v421, 24
    %v433 = vpop.permute.xlu0 %432
    %v435 = vsel %vm114, %v187, %v425
    %vm436 = vcmask 130048
    %v437 = vsel %vm436, %v435, %v429
    %vm438 = vcmask 195584
    %v439 = vsel %vm438, %v437, %v433
    %440 = vrot.lane.b32.xlu0 %v240, 8
    %v441 = vpop.permute.xlu0 %440
    %443 = vrot.lane.b32.xlu0 %v318, 16
    %v444 = vpop.permute.xlu0 %443
    %446 = vrot.lane.b32.xlu0 %v396, 24
    %v447 = vpop.permute.xlu0 %446
    %v449 = vsel %vm114, %v162, %v441
    %v450 = vsel %vm436, %v449, %v444
    %v451 = vsel %vm438, %v450, %v447
    %453 = vrot.lane.b32.xlu0 %v109, 96
    %v454 = vpop.permute.xlu0 %453
    %v455 = vsel %vm114, %v109, 0
    %v457 = vsel %vm114, %v454, 0
    %459 = vmatpush.xpose.msra.mxu0 0.0
    %460 = vmatpush.xpose.msra.mxu0 0.0
    %461 = vmatpush.xpose.msra.mxu0 0.0
    %462 = vmatpush.xpose.msra.mxu0 0.0
    %463 = vmatpush.xpose.msra.mxu0 0.0
    %464 = vmatpush.xpose.msra.mxu0 0.0
    %465 = vmatpush.xpose.msra.mxu0 0.0
    %466 = vmatpush.xpose.msra.mxu0 0.0
    %467 = vmatpush.xpose.msra.mxu0 0.0
    %468 = vmatpush.xpose.msra.mxu0 0.0
    %469 = vmatpush.xpose.msra.mxu0 0.0
    %470 = vmatpush.xpose.msra.mxu0 0.0
    %471 = vmatpush.xpose.msra.mxu0 0.0
    %472 = vmatpush.xpose.msra.mxu0 0.0
    %473 = vmatpush.xpose.msra.mxu0 0.0
    %474 = vmatpush.xpose.msra.mxu0 %v457
    %475 = vmatmul.f32.gmra.mxu0 %v455
    %v476 = vpop.f32.mrf.mxu0
    %v477 = vadd.f32 0.0, %v476
    %478 = vdwg.mxu0
    %v479 = vsel %vm114, %v477, -inf
    %480 = vmax.xlane.f32.xlu0 %v479
    %v481 = vpop.xlane.xlu0 %480
    %v482 = vsub.f32 %v477, %v481
    %v483 = vmul.f32 %v482, 1.442695
    %v484 = vpow.pop %v483
    %v485 = vsel %vm114, %v484, 0.0
    %486 = vadd.xlane.f32.xlu0 %v485
    %v487 = vpop.xlane.xlu0 %486
    %v488 = vrcp.pop %v487
    %v489 = vmul.f32 %v487, %v488
    %v490 = vsub.f32 1.0, %v489
    %v491 = vmul.f32 %v488, %v490
    %v492 = vadd.f32 %v488, %v491
    %vm493 = vweird.f32 %v487
    %vm494 = vweird.f32 %v488
    %vm495 = vmor %vm493, %vm494
    %v496 = vsel %vm495, %v488, %v492
    %v497 = vand.u32 2147483647, %v487
    %vm498 = vcmp.eq.f32.partialorder %v497, 8.507059e+37
    %v499 = vand.u32 %v487, 2147483648
    %v500 = vor.u32 1.1754944e-38, %v499
    %v501 = vsel %vm498, %v500, %v496
    %v502 = vmul.f32 %v484, %v501
    %503 = vrot.lane.b32.xlu0 %v109, 64
    %v504 = vpop.permute.xlu0 %503
    %v507 = vsel %vm114, %v502, 0
    %509 = vmatpush.msra.mxu0 0.0
    %510 = vmatpush.msra.mxu0 0.0
    %511 = vmatpush.msra.mxu0 0.0
    %512 = vmatpush.msra.mxu0 0.0
    %513 = vmatpush.msra.mxu0 0.0
    %514 = vmatpush.msra.mxu0 0.0
    %515 = vmatpush.msra.mxu0 0.0
    %516 = vmatpush.msra.mxu0 0.0
    %517 = vmatpush.msra.mxu0 0.0
    %518 = vmatpush.msra.mxu0 0.0
    %519 = vmatpush.msra.mxu0 0.0
    %520 = vmatpush.msra.mxu0 0.0
    %521 = vmatpush.msra.mxu0 0.0
    %522 = vmatpush.msra.mxu0 0.0
    %523 = vmatpush.msra.mxu0 0.0
    %524 = vmatpush.msra.mxu0 %v504
    %525 = vmatmul.f32.gmra.mxu0 %v507
    %v526 = vpop.f32.mrf.mxu0
    %v527 = vadd.f32 0.0, %v526
    %528 = vdwg.mxu0
    %529 = vrot.lane.b32.xlu0 %v109, 120
    %v530 = vpop.permute.xlu0 %529
    %531 = vrot.lane.b32.xlu0 %v109, 88
    %v532 = vpop.permute.xlu0 %531
    %v533 = vsel %vm114, %v530, 0
    %v535 = vsel %vm114, %v532, 0
    %537 = vmatpush.xpose.msra.mxu0 0.0
    %538 = vmatpush.xpose.msra.mxu0 0.0
    %539 = vmatpush.xpose.msra.mxu0 0.0
    %540 = vmatpush.xpose.msra.mxu0 0.0
    %541 = vmatpush.xpose.msra.mxu0 0.0
    %542 = vmatpush.xpose.msra.mxu0 0.0
    %543 = vmatpush.xpose.msra.mxu0 0.0
    %544 = vmatpush.xpose.msra.mxu0 0.0
    %545 = vmatpush.xpose.msra.mxu0 0.0
    %546 = vmatpush.xpose.msra.mxu0 0.0
    %547 = vmatpush.xpose.msra.mxu0 0.0
    %548 = vmatpush.xpose.msra.mxu0 0.0
    %549 = vmatpush.xpose.msra.mxu0 0.0
    %550 = vmatpush.xpose.msra.mxu0 0.0
    %551 = vmatpush.xpose.msra.mxu0 0.0
    %552 = vmatpush.xpose.msra.mxu0 %v535
    %553 = vmatmul.f32.gmra.mxu0 %v533
    %v554 = vpop.f32.mrf.mxu0
    %v555 = vadd.f32 0.0, %v554
    %556 = vdwg.mxu0
    %v557 = vsel %vm114, %v555, -inf
    %558 = vmax.xlane.f32.xlu0 %v557
    %v559 = vpop.xlane.xlu0 %558
    %v560 = vsub.f32 %v555, %v559
    %v561 = vmul.f32 %v560, 1.442695
    %v562 = vpow.pop %v561
    %v563 = vsel %vm114, %v562, 0.0
    %564 = vadd.xlane.f32.xlu0 %v563
    %v565 = vpop.xlane.xlu0 %564
    %v566 = vrcp.pop %v565
    %v567 = vmul.f32 %v565, %v566
    %v568 = vsub.f32 1.0, %v567
    %v569 = vmul.f32 %v566, %v568
    %v570 = vadd.f32 %v566, %v569
    %vm571 = vweird.f32 %v565
    %vm572 = vweird.f32 %v566
    %vm573 = vmor %vm571, %vm572
    %v574 = vsel %vm573, %v566, %v570
    %v575 = vand.u32 2147483647, %v565
    %vm576 = vcmp.eq.f32.partialorder %v575, 8.507059e+37
    %v577 = vand.u32 %v565, 2147483648
    %v578 = vor.u32 1.1754944e-38, %v577
    %v579 = vsel %vm576, %v578, %v574
    %v580 = vmul.f32 %v562, %v579
    %581 = vrot.lane.b32.xlu0 %v109, 56
    %v582 = vpop.permute.xlu0 %581
    %v585 = vsel %vm114, %v580, 0
    %587 = vmatpush.msra.mxu0 0.0
    %588 = vmatpush.msra.mxu0 0.0
    %589 = vmatpush.msra.mxu0 0.0
    %590 = vmatpush.msra.mxu0 0.0
    %591 = vmatpush.msra.mxu0 0.0
    %592 = vmatpush.msra.mxu0 0.0
    %593 = vmatpush.msra.mxu0 0.0
    %594 = vmatpush.msra.mxu0 0.0
    %595 = vmatpush.msra.mxu0 0.0
    %596 = vmatpush.msra.mxu0 0.0
    %597 = vmatpush.msra.mxu0 0.0
    %598 = vmatpush.msra.mxu0 0.0
    %599 = vmatpush.msra.mxu0 0.0
    %600 = vmatpush.msra.mxu0 0.0
    %601 = vmatpush.msra.mxu0 0.0
    %602 = vmatpush.msra.mxu0 %v582
    %603 = vmatmul.f32.gmra.mxu0 %v585
    %v604 = vpop.f32.mrf.mxu0
    %v605 = vadd.f32 0.0, %v604
    %606 = vdwg.mxu0
    %607 = vrot.lane.b32.xlu0 %v109, 112
    %v608 = vpop.permute.xlu0 %607
    %609 = vrot.lane.b32.xlu0 %v109, 80
    %v610 = vpop.permute.xlu0 %609
    %v611 = vsel %vm114, %v608, 0
    %v613 = vsel %vm114, %v610, 0
    %615 = vmatpush.xpose.msra.mxu0 0.0
    %616 = vmatpush.xpose.msra.mxu0 0.0
    %617 = vmatpush.xpose.msra.mxu0 0.0
    %618 = vmatpush.xpose.msra.mxu0 0.0
    %619 = vmatpush.xpose.msra.mxu0 0.0
    %620 = vmatpush.xpose.msra.mxu0 0.0
    %621 = vmatpush.xpose.msra.mxu0 0.0
    %622 = vmatpush.xpose.msra.mxu0 0.0
    %623 = vmatpush.xpose.msra.mxu0 0.0
    %624 = vmatpush.xpose.msra.mxu0 0.0
    %625 = vmatpush.xpose.msra.mxu0 0.0
    %626 = vmatpush.xpose.msra.mxu0 0.0
    %627 = vmatpush.xpose.msra.mxu0 0.0
    %628 = vmatpush.xpose.msra.mxu0 0.0
    %629 = vmatpush.xpose.msra.mxu0 0.0
    %630 = vmatpush.xpose.msra.mxu0 %v613
    %631 = vmatmul.f32.gmra.mxu0 %v611
    %v632 = vpop.f32.mrf.mxu0
    %v633 = vadd.f32 0.0, %v632
    %634 = vdwg.mxu0
    %v635 = vsel %vm114, %v633, -inf
    %636 = vmax.xlane.f32.xlu0 %v635
    %v637 = vpop.xlane.xlu0 %636
    %v638 = vsub.f32 %v633, %v637
    %v639 = vmul.f32 %v638, 1.442695
    %v640 = vpow.pop %v639
    %v641 = vsel %vm114, %v640, 0.0
    %642 = vadd.xlane.f32.xlu0 %v641
    %v643 = vpop.xlane.xlu0 %642
    %v644 = vrcp.pop %v643
    %v645 = vmul.f32 %v643, %v644
    %v646 = vsub.f32 1.0, %v645
    %v647 = vmul.f32 %v644, %v646
    %v648 = vadd.f32 %v644, %v647
    %vm649 = vweird.f32 %v643
    %vm650 = vweird.f32 %v644
    %vm651 = vmor %vm649, %vm650
    %v652 = vsel %vm651, %v644, %v648
    %v653 = vand.u32 2147483647, %v643
    %vm654 = vcmp.eq.f32.partialorder %v653, 8.507059e+37
    %v655 = vand.u32 %v643, 2147483648
    %v656 = vor.u32 1.1754944e-38, %v655
    %v657 = vsel %vm654, %v656, %v652
    %v658 = vmul.f32 %v640, %v657
    %659 = vrot.lane.b32.xlu0 %v109, 48
    %v660 = vpop.permute.xlu0 %659
    %v663 = vsel %vm114, %v658, 0
    %665 = vmatpush.msra.mxu0 0.0
    %666 = vmatpush.msra.mxu0 0.0
    %667 = vmatpush.msra.mxu0 0.0
    %668 = vmatpush.msra.mxu0 0.0
    %669 = vmatpush.msra.mxu0 0.0
    %670 = vmatpush.msra.mxu0 0.0
    %671 = vmatpush.msra.mxu0 0.0
    %672 = vmatpush.msra.mxu0 0.0
    %673 = vmatpush.msra.mxu0 0.0
    %674 = vmatpush.msra.mxu0 0.0
    %675 = vmatpush.msra.mxu0 0.0
    %676 = vmatpush.msra.mxu0 0.0
    %677 = vmatpush.msra.mxu0 0.0
    %678 = vmatpush.msra.mxu0 0.0
    %679 = vmatpush.msra.mxu0 0.0
    %680 = vmatpush.msra.mxu0 %v660
    %681 = vmatmul.f32.gmra.mxu0 %v663
    %v682 = vpop.f32.mrf.mxu0
    %v683 = vadd.f32 0.0, %v682
    %684 = vdwg.mxu0
    %685 = vrot.lane.b32.xlu0 %v109, 104
    %v686 = vpop.permute.xlu0 %685
    %687 = vrot.lane.b32.xlu0 %v109, 72
    %v688 = vpop.permute.xlu0 %687
    %v689 = vsel %vm114, %v686, 0
    %v691 = vsel %vm114, %v688, 0
    %693 = vmatpush.xpose.msra.mxu0 0.0
    %694 = vmatpush.xpose.msra.mxu0 0.0
    %695 = vmatpush.xpose.msra.mxu0 0.0
    %696 = vmatpush.xpose.msra.mxu0 0.0
    %697 = vmatpush.xpose.msra.mxu0 0.0
    %698 = vmatpush.xpose.msra.mxu0 0.0
    %699 = vmatpush.xpose.msra.mxu0 0.0
    %700 = vmatpush.xpose.msra.mxu0 0.0
    %701 = vmatpush.xpose.msra.mxu0 0.0
    %702 = vmatpush.xpose.msra.mxu0 0.0
    %703 = vmatpush.xpose.msra.mxu0 0.0
    %704 = vmatpush.xpose.msra.mxu0 0.0
    %705 = vmatpush.xpose.msra.mxu0 0.0
    %706 = vmatpush.xpose.msra.mxu0 0.0
    %707 = vmatpush.xpose.msra.mxu0 0.0
    %708 = vmatpush.xpose.msra.mxu0 %v691
    %709 = vmatmul.f32.gmra.mxu0 %v689
    %v710 = vpop.f32.mrf.mxu0
    %v711 = vadd.f32 0.0, %v710
    %712 = vdwg.mxu0
    %v713 = vsel %vm114, %v711, -inf
    %714 = vmax.xlane.f32.xlu0 %v713
    %v715 = vpop.xlane.xlu0 %714
    %v716 = vsub.f32 %v711, %v715
    %v717 = vmul.f32 %v716, 1.442695
    %v718 = vpow.pop %v717
    %v719 = vsel %vm114, %v718, 0.0
    %720 = vadd.xlane.f32.xlu0 %v719
    %v721 = vpop.xlane.xlu0 %720
    %v722 = vrcp.pop %v721
    %v723 = vmul.f32 %v721, %v722
    %v724 = vsub.f32 1.0, %v723
    %v725 = vmul.f32 %v722, %v724
    %v726 = vadd.f32 %v722, %v725
    %vm727 = vweird.f32 %v721
    %vm728 = vweird.f32 %v722
    %vm729 = vmor %vm727, %vm728
    %v730 = vsel %vm729, %v722, %v726
    %v731 = vand.u32 2147483647, %v721
    %vm732 = vcmp.eq.f32.partialorder %v731, 8.507059e+37
    %v733 = vand.u32 %v721, 2147483648
    %v734 = vor.u32 1.1754944e-38, %v733
    %v735 = vsel %vm732, %v734, %v730
    %v736 = vmul.f32 %v718, %v735
    %737 = vrot.lane.b32.xlu0 %v109, 40
    %v738 = vpop.permute.xlu0 %737
    %v741 = vsel %vm114, %v736, 0
    %743 = vmatpush.msra.mxu0 0.0
    %744 = vmatpush.msra.mxu0 0.0
    %745 = vmatpush.msra.mxu0 0.0
    %746 = vmatpush.msra.mxu0 0.0
    %747 = vmatpush.msra.mxu0 0.0
    %748 = vmatpush.msra.mxu0 0.0
    %749 = vmatpush.msra.mxu0 0.0
    %750 = vmatpush.msra.mxu0 0.0
    %751 = vmatpush.msra.mxu0 0.0
    %752 = vmatpush.msra.mxu0 0.0
    %753 = vmatpush.msra.mxu0 0.0
    %754 = vmatpush.msra.mxu0 0.0
    %755 = vmatpush.msra.mxu0 0.0
    %756 = vmatpush.msra.mxu0 0.0
    %757 = vmatpush.msra.mxu0 0.0
    %758 = vmatpush.msra.mxu0 %v738
    %759 = vmatmul.f32.gmra.mxu0 %v741
    %v760 = vpop.f32.mrf.mxu0
    %v761 = vadd.f32 0.0, %v760
    %762 = vdwg.mxu0
    %764 = vrot.lane.b32.xlu0 %v605, 8
    %v765 = vpop.permute.xlu0 %764
    %768 = vrot.lane.b32.xlu0 %v683, 16
    %v769 = vpop.permute.xlu0 %768
    %772 = vrot.lane.b32.xlu0 %v761, 24
    %v773 = vpop.permute.xlu0 %772
    %v775 = vsel %vm114, %v527, %v765
    %v776 = vsel %vm436, %v775, %v769
    %v777 = vsel %vm438, %v776, %v773
    %778 = vrot.lane.b32.xlu0 %v580, 8
    %v779 = vpop.permute.xlu0 %778
    %781 = vrot.lane.b32.xlu0 %v658, 16
    %v782 = vpop.permute.xlu0 %781
    %784 = vrot.lane.b32.xlu0 %v736, 24
    %v785 = vpop.permute.xlu0 %784
    %v787 = vsel %vm114, %v502, %v779
    %v788 = vsel %vm436, %v787, %v782
    %v789 = vsel %vm438, %v788, %v785
    %v790 = vld [vmem:[#allocation7] sm:$0xff]
    %v791 = vld [vmem:[#allocation7 + $0x8] sm:$0xff]
    %v792 = vld [vmem:[#allocation7 + $0x10] sm:$0xff]
    %v793 = vld [vmem:[#allocation7 + $0x18] sm:$0xff]
    %v794 = vld [vmem:[%s4] sm:$0x1]
    %v796 = vperm.slane %v794, 0
    %v799 = vsel %vm81, %v439, 0
    %v802 = vsel %vm81, %v777, 0
    %804 = vmatpush.msra.mxu0 0.0
    %805 = vmatpush.msra.mxu0 0.0
    %806 = vmatpush.msra.mxu0 0.0
    %807 = vmatpush.msra.mxu0 0.0
    %808 = vmatpush.msra.mxu0 0.0
    %809 = vmatpush.msra.mxu0 0.0
    %810 = vmatpush.msra.mxu0 0.0
    %811 = vmatpush.msra.mxu0 0.0
    %812 = vmatpush.msra.mxu0 0.0
    %813 = vmatpush.msra.mxu0 0.0
    %814 = vmatpush.msra.mxu0 0.0
    %815 = vmatpush.msra.mxu0 0.0
    %816 = vmatpush.msra.mxu0 %v793
    %817 = vmatpush.msra.mxu0 %v792
    %818 = vmatpush.msra.mxu0 %v791
    %819 = vmatpush.msra.mxu0 %v790
    %820 = vmatmul.f32.gmra.mxu0 %v799
    %v821 = vpop.f32.mrf.mxu0
    %v822 = vadd.f32 %v796, %v821
    %823 = vmatmul.f32.gmra.mxu0 %v802
    %v824 = vpop.f32.mrf.mxu0
    %v825 = vadd.f32 %v796, %v824
    %826 = vdwg.mxu0
    %827 = vst.msk [vmem:[#allocation8] sm:$0xff] %vm81, %v822
    %828 = vst.msk [vmem:[#allocation8 + $0x8] sm:$0xff] %vm81, %v825
    %829 = vst.msk [vmem:[#allocation9] sm:$0xff] %vm81, %v451
    %830 = vst.msk [vmem:[#allocation9 + $0x8] sm:$0xff] %vm81, %v789
    // Predicated region
    $region34: #{tpu_custom_call.1} parent=1 // pred_check
      _
    $region35: #{tpu_custom_call.1} parent=1 // pred_check_branch
      %832 = sbr.rel (0) target = $region37
    $region36: #{tpu_custom_call.1} parent=1 // pred_region
      %834 = vsyncadd [#allocation4], 0
      %s835 = sshll.u32 [#allocation8], 4
      %s836 = int_to_ptr.vmem [resolvable:$true] %s835
      %s837 = sshll.u32 %s5, 4
      %s838 = int_to_ptr.hbm [resolvable:$true] %s837
      %843 = dma.vmem_to_hbm [thread:$0]  %s836, 256, %s838, [#allocation4], 128, 128, 8
    $region37: #{tpu_custom_call.1} parent=1 // pred_fallthru
      _
    // Predicated region
    $region38: #{tpu_custom_call.1} parent=1 // pred_check
      _
    $region39: #{tpu_custom_call.1} parent=1 // pred_check_branch
      %845 = sbr.rel (0) target = $region41
    $region40: #{tpu_custom_call.1} parent=1 // pred_region
      %847 = vsyncadd [#allocation10], 0
      %s848 = sshll.u32 [#allocation9], 4
      %s849 = int_to_ptr.vmem [resolvable:$true] %s848
      %s850 = sshll.u32 %s6, 4
      %s851 = int_to_ptr.hbm [resolvable:$true] %s850
      %856 = dma.vmem_to_hbm [thread:$0]  %s849, 256, %s851, [#allocation10], 128, 128, 8
    $region41: #{tpu_custom_call.1} parent=1 // pred_fallthru
      _
    // Predicated region
    $region42: #{tpu_custom_call.1} parent=1 // pred_check
      _
    $region43: #{tpu_custom_call.1} parent=1 // pred_check_branch
      %858 = sbr.rel (0) target = $region45
    $region44: #{tpu_custom_call.1} parent=1 // pred_region
      %860 = dma.done [#allocation4], 256
    $region45: #{tpu_custom_call.1} parent=1 // pred_fallthru
      _
    // Predicated region
    $region46: #{tpu_custom_call.1} parent=1 // pred_check
      _
    $region47: #{tpu_custom_call.1} parent=1 // pred_check_branch
      %862 = sbr.rel (0) target = $region49
    $region48: #{tpu_custom_call.1} parent=1 // pred_region
      %864 = dma.done [#allocation10], 256
    $region49: #{tpu_custom_call.1} parent=1 // pred_fallthru
      _
    %865 = vsyncpa [#allocation3], 1
    %866 = vsyncpa [#allocation6], 1
    %867 = vsyncpa [#allocation4], 1
    %868 = vsyncpa [#allocation10], 1

</llo_original>
